<compile_context>
chip_gen: v7x
topology: tpu7x:2x2x1
jax: 0.10.0
libtpu: 0.0.40
codegen_flags: <defaults>
</compile_context>

<pallas_src>
import functools

import jax
import jax.numpy as jnp
from jax.experimental import pallas as pl
from jax.experimental.pallas import tpu as pltpu


def _round_up(n, m):
    return ((n + m - 1) // m) * m


# ----------------------------------------------------------------------------
# Fused Pallas kernel: 4-layer MLP + sigmoid + sell/buy split + L1 normalize
# ----------------------------------------------------------------------------
def _policy_kernel(x_ref, w1_ref, b1_ref, w2_ref, b2_ref, w3_ref, b3_ref,
                   w4_ref, b4_ref, m_ref, out_ref):
    """out = [sell_flat | L1-normalized buy_flat | pad]  (lane-dense, width OUT_PAD)."""
    x = x_ref[...]
    h = jnp.dot(x, w1_ref[...], preferred_element_type=jnp.float32) + b1_ref[...]
    h = jnp.maximum(h, 0.0)
    h = jnp.dot(h, w2_ref[...], preferred_element_type=jnp.float32) + b2_ref[...]
    h = jnp.maximum(h, 0.0)
    # Dropout(0.25) is identity in eval/inference mode.
    h = jnp.dot(h, w3_ref[...], preferred_element_type=jnp.float32) + b3_ref[...]
    h = jnp.maximum(h, 0.0)
    h = jnp.dot(h, w4_ref[...], preferred_element_type=jnp.float32) + b4_ref[...]
    a = jax.nn.sigmoid(h)                               # (Bt, OUT_PAD)

    # Per-day L1 sums broadcast back onto the buy columns via a constant
    # block-diagonal matrix; sell / pad columns get 0 -> divide by 1 (no-op).
    den = jnp.dot(a, m_ref[...], preferred_element_type=jnp.float32)
    den = jnp.where(den > 0.0, jnp.maximum(den, 1e-12), 1.0)
    # NOTE: pl.reciprocal(den, approx=True) would push the divide to the EUP
    # slot at the cost of ~1e-4 relative error; exact is kept for fidelity.
    out_ref[...] = a * pl.reciprocal(den, approx=False)


def run_policy_mlp(x_padded, packed):
    """x_padded: (B, IN_PAD) float32.  Returns (B, OUT_PAD) = [sell|buy|pad]."""
    w1, b1, w2, b2, w3, b3, w4, b4, m_day = packed
    B, in_pad = x_padded.shape
    out_pad = w4.shape[1]

    b_tile = min(128, _round_up(B, 8))
    b_padded = _round_up(B, b_tile)
    if b_padded != B:
        x_padded = jnp.pad(x_padded, ((0, b_padded - B), (0, 0)))

    weight_args = (w1, b1, w2, b2, w3, b3, w4, b4, m_day)
    weight_specs = [pl.BlockSpec(w.shape, lambda i: (0, 0)) for w in weight_args]

    out = pl.pallas_call(
        _policy_kernel,
        out_shape=jax.ShapeDtypeStruct((b_padded, out_pad), jnp.float32),
        grid=(b_padded // b_tile,),
        in_specs=[pl.BlockSpec((b_tile, in_pad), lambda i: (i, 0))] + weight_specs,
        out_specs=pl.BlockSpec((b_tile, out_pad), lambda i: (i, 0)),
        compiler_params=pltpu.CompilerParams(
            dimension_semantics=("parallel",)),   # batch tiles -> both v7x TCs
    )(x_padded, *weight_args)
    return out[:B]


# ----------------------------------------------------------------------------
# Parameter init (PyTorch nn.Linear-style) and packing to padded/permuted form
# ----------------------------------------------------------------------------
def init_params(key, input_len, output_len):
    ks = jax.random.split(key, 8)

    def lin(kw, kb, fan_in, fan_out):
        bound = 1.0 / (fan_in ** 0.5)
        w = jax.random.uniform(kw, (fan_in, fan_out), jnp.float32, -bound, bound)
        b = jax.random.uniform(kb, (fan_out,), jnp.float32, -bound, bound)
        return w, b

    w1, b1 = lin(ks[0], ks[1], input_len, 128)
    w2, b2 = lin(ks[2], ks[3], 128, 128)
    w3, b3 = lin(ks[4], ks[5], 128, 64)
    w4, b4 = lin(ks[6], ks[7], 64, output_len)
    return (w1, b1, w2, b2, w3, b3, w4, b4)


def pack_params(params, num_assets, seq_len):
    """Zero-pad all dims to multiples of 128, permute the final layer so its
    output is [sell_flat | buy_flat | pad], and build the day-sum matrix."""
    w1, b1, w2, b2, w3, b3, w4, b4 = params
    A, S = num_assets, seq_len
    C = 2 * A + 1
    in_len, out_len = w1.shape[0], w4.shape[1]
    assert out_len == S * C, (out_len, S, C)

    IN_PAD = _round_up(in_len, 128)
    H3_PAD = _round_up(w3.shape[1], 128)          # 64 -> 128
    OUT_PAD = _round_up(out_len, 128)             # 72 -> 128

    def pad2(w, r, c):
        return jnp.pad(w, ((0, r - w.shape[0]), (0, c - w.shape[1])))

    def padb(b, c):
        return jnp.pad(b.reshape(1, -1), ((0, 0), (0, c - b.shape[0])))

    # Column permutation of the last layer: day-major [sell(A) | buy(A+1)]
    # interleaving -> contiguous [all sell | all buy].
    day = jnp.arange(S)
    sell_cols = (day[:, None] * C + jnp.arange(A)[None, :]).reshape(-1)          # (S*A,)
    buy_cols = (day[:, None] * C + A + jnp.arange(A + 1)[None, :]).reshape(-1)   # (S*(A+1),)
    perm = jnp.concatenate([sell_cols, buy_cols])

    w4p = pad2(w4[:, perm], H3_PAD, OUT_PAD)
    b4p = padb(b4[perm], OUT_PAD)

    # Day-sum matrix: den = sigmoid_out @ M gives each buy column its day's
    # L1 sum; sell / pad columns map to 0.
    nb = S * (A + 1)
    base = S * A
    group = jnp.arange(nb) // (A + 1)
    blk = (group[:, None] == group[None, :]).astype(jnp.float32)
    m_day = jnp.zeros((OUT_PAD, OUT_PAD), jnp.float32)
    m_day = m_day.at[base:base + nb, base:base + nb].set(blk)

    return (pad2(w1, IN_PAD, 128), padb(b1, 128),
            pad2(w2, 128, 128), padb(b2, 128),
            pad2(w3, 128, H3_PAD), padb(b3, H3_PAD),
            w4p, b4p, m_day)


# ----------------------------------------------------------------------------
# Full forward pass (preprocessing glue fused under jit + one Pallas kernel)
# ----------------------------------------------------------------------------
def seq2seq_policy_forward(init_portfolio, prices_seq, tradability, packed,
                           num_assets, seq_len, regular_input=True,
                           consider_tradability=True):
    B = init_portfolio.shape[0]
    A, S = num_assets, seq_len

    if regular_input:
        # F.normalize(init_portfolio, dim=-1)  (p=2, eps=1e-12)
        norm = jnp.maximum(
            jnp.sqrt(jnp.sum(init_portfolio * init_portfolio, axis=-1, keepdims=True)),
            1e-12)
        init_portfolio = init_portfolio / norm
        # prices_seq / |prices_seq.max()|  -- global max, no eps (matches PyTorch).
        prices_seq = prices_seq / jnp.abs(jnp.max(prices_seq))

    # seq_mode == 'delta': x - x[:, 0] broadcast over seq, then flatten.
    seq_code = (prices_seq - prices_seq[:, 0:1, :]).reshape(B, -1)
    x = jnp.concatenate([init_portfolio, seq_code], axis=-1)
    if consider_tradability:
        x = jnp.concatenate([x, tradability.reshape(B, -1)], axis=-1)
    x = x.astype(jnp.float32)

    in_pad = packed[0].shape[0]
    x = jnp.pad(x, ((0, 0), (0, in_pad - x.shape[1])))

    out = run_policy_mlp(x, packed)                      # (B, OUT_PAD) = [sell|buy|pad]
    sell = out[:, :S * A].reshape(B, S, A)
    buy = out[:, S * A:S * A + S * (A + 1)].reshape(B, S, A + 1)
    # TODO(synk): seq_mode 'gru' / 'deri-1', output_daily=True, and training-mode
    # Dropout are not exercised by this kernel.
    return sell, buy


# ----------------------------------------------------------------------------
# Pure-JAX reference for self-checking
# ----------------------------------------------------------------------------
def _reference_forward(init_portfolio, prices_seq, tradability, params, A, S):
    w1, b1, w2, b2, w3, b3, w4, b4 = params
    ip = init_portfolio / jnp.maximum(
        jnp.sqrt(jnp.sum(init_portfolio ** 2, -1, keepdims=True)), 1e-12)
    ps = prices_seq / jnp.abs(jnp.max(prices_seq))
    B = ip.shape[0]
    seq_code = (ps - ps[:, 0:1, :]).reshape(B, -1)
    x = jnp.concatenate([ip, seq_code, tradability.reshape(B, -1)], -1).astype(jnp.float32)
    hp = "highest"
    h = jax.nn.relu(jnp.dot(x, w1, precision=hp) + b1)
    h = jax.nn.relu(jnp.dot(h, w2, precision=hp) + b2)
    h = jax.nn.relu(jnp.dot(h, w3, precision=hp) + b3)
    a = jax.nn.sigmoid(jnp.dot(h, w4, precision=hp) + b4).reshape(B, S, -1)
    sell = a[..., :A]
    braw = a[..., A:]
    buy = braw / jnp.maximum(jnp.sum(jnp.abs(braw), -1, keepdims=True), 1e-12)
    return sell, buy


# ----------------------------------------------------------------------------
if __name__ == "__main__":
    B, A, S = 2, 4, 8   # batch, num_assets, seq_len

    key = jax.random.PRNGKey(0)
    k1, k2, k3, kp = jax.random.split(key, 4)
    init_portfolio = jax.random.uniform(k1, (B, A + 1), jnp.float32, 0.0, 10.0)
    prices_seq = jax.random.uniform(k2, (B, S, A), jnp.float32, 1.0, 5.0)
    tradability = (jax.random.uniform(k3, (B, S, A)) > 0.5).astype(jnp.float32)

    # input_len for seq_mode='delta' + consider_tradability: (1 + A) + A*S + A*S
    input_len = 1 + A + A * S + A * S
    output_len = S * (A * 2 + 1)
    params = init_params(kp, input_len, output_len)
    packed = pack_params(params, num_assets=A, seq_len=S)

    fwd = jax.jit(functools.partial(seq2seq_policy_forward, num_assets=A, seq_len=S))
    sell, buy = fwd(init_portfolio, prices_seq, tradability, packed)
    jax.block_until_ready((sell, buy))

    assert sell.shape == (B, S, A), sell.shape
    assert buy.shape == (B, S, A + 1), buy.shape
    # buy rows are exactly L1-normalized (exact divide in the kernel epilogue).
    assert bool(jnp.all(jnp.abs(jnp.sum(buy, axis=-1) - 1.0) < 1e-4))

    # Cross-check against a pure-JAX reference (tolerance allows for MXU f32
    # accumulation differences; structural bugs would show O(0.1) errors).
    sell_ref, buy_ref = _reference_forward(init_portfolio, prices_seq, tradability,
                                           params, A, S)
    assert bool(jnp.max(jnp.abs(sell - sell_ref)) < 1e-2)
    assert bool(jnp.max(jnp.abs(buy - buy_ref)) < 1e-2)

    print("KERNEL_OK")
</pallas_src>

<mosaic_0001>
module attributes {stable_mosaic.version = 11 : i64} {
  func.func @_policy_kernel(%arg0: i32, %arg1: memref<8x128xf32, #tpu.memory_space<vmem>>, %arg2: memref<128x128xf32, #tpu.memory_space<vmem>>, %arg3: memref<1x128xf32, #tpu.memory_space<vmem>>, %arg4: memref<128x128xf32, #tpu.memory_space<vmem>>, %arg5: memref<1x128xf32, #tpu.memory_space<vmem>>, %arg6: memref<128x128xf32, #tpu.memory_space<vmem>>, %arg7: memref<1x128xf32, #tpu.memory_space<vmem>>, %arg8: memref<128x128xf32, #tpu.memory_space<vmem>>, %arg9: memref<1x128xf32, #tpu.memory_space<vmem>>, %arg10: memref<128x128xf32, #tpu.memory_space<vmem>>, %arg11: memref<8x128xf32, #tpu.memory_space<vmem>>) attributes {dimension_semantics = [#tpu.dimension_semantics<parallel>], iteration_bounds = array<i64: 1>, scalar_prefetch = 0 : i64, scratch_operands = 0 : i64, tpu.core_type = #tpu.core_type<tc>, window_params = [{transform_indices = @transform_0, window_bounds = array<i64: 8, 128>}, {pipeline_mode = #tpu.pipeline_mode<synchronous>, transform_indices = @transform_1, window_bounds = array<i64: 128, 128>}, {pipeline_mode = #tpu.pipeline_mode<synchronous>, transform_indices = @transform_2, window_bounds = array<i64: 1, 128>}, {pipeline_mode = #tpu.pipeline_mode<synchronous>, transform_indices = @transform_3, window_bounds = array<i64: 128, 128>}, {pipeline_mode = #tpu.pipeline_mode<synchronous>, transform_indices = @transform_4, window_bounds = array<i64: 1, 128>}, {pipeline_mode = #tpu.pipeline_mode<synchronous>, transform_indices = @transform_5, window_bounds = array<i64: 128, 128>}, {pipeline_mode = #tpu.pipeline_mode<synchronous>, transform_indices = @transform_6, window_bounds = array<i64: 1, 128>}, {pipeline_mode = #tpu.pipeline_mode<synchronous>, transform_indices = @transform_7, window_bounds = array<i64: 128, 128>}, {pipeline_mode = #tpu.pipeline_mode<synchronous>, transform_indices = @transform_8, window_bounds = array<i64: 1, 128>}, {pipeline_mode = #tpu.pipeline_mode<synchronous>, transform_indices = @transform_9, window_bounds = array<i64: 128, 128>}, {transform_indices = @transform_10, window_bounds = array<i64: 8, 128>}]} {
    %c0 = arith.constant 0 : index
    %c0_0 = arith.constant 0 : index
    %0 = vector.load %arg1[%c0, %c0_0] : memref<8x128xf32, #tpu.memory_space<vmem>>, vector<8x128xf32>
    %c0_1 = arith.constant 0 : index
    %c0_2 = arith.constant 0 : index
    %1 = vector.load %arg2[%c0_1, %c0_2] : memref<128x128xf32, #tpu.memory_space<vmem>>, vector<128x128xf32>
    %cst = arith.constant dense<0.000000e+00> : vector<8x128xf32>
    %2 = tpu.matmul %0, %1, %cst {dimension_numbers = #tpu.dot_dimension_numbers<[1], [0], [0], [1], [0, 0, 1, 1], [], []>} : vector<8x128xf32>, vector<128x128xf32>, vector<8x128xf32> -> vector<8x128xf32>
    %c0_3 = arith.constant 0 : index
    %c0_4 = arith.constant 0 : index
    %3 = vector.load %arg3[%c0_3, %c0_4] : memref<1x128xf32, #tpu.memory_space<vmem>>, vector<1x128xf32>
    %4 = vector.broadcast %3 : vector<1x128xf32> to vector<8x128xf32>
    %5 = arith.addf %2, %4 : vector<8x128xf32>
    %cst_5 = arith.constant 0.000000e+00 : f32
    %6 = vector.broadcast %cst_5 : f32 to vector<8x128xf32>
    %7 = arith.maximumf %5, %6 : vector<8x128xf32>
    %c0_6 = arith.constant 0 : index
    %c0_7 = arith.constant 0 : index
    %8 = vector.load %arg4[%c0_6, %c0_7] : memref<128x128xf32, #tpu.memory_space<vmem>>, vector<128x128xf32>
    %cst_8 = arith.constant dense<0.000000e+00> : vector<8x128xf32>
    %9 = tpu.matmul %7, %8, %cst_8 {dimension_numbers = #tpu.dot_dimension_numbers<[1], [0], [0], [1], [0, 0, 1, 1], [], []>} : vector<8x128xf32>, vector<128x128xf32>, vector<8x128xf32> -> vector<8x128xf32>
    %c0_9 = arith.constant 0 : index
    %c0_10 = arith.constant 0 : index
    %10 = vector.load %arg5[%c0_9, %c0_10] : memref<1x128xf32, #tpu.memory_space<vmem>>, vector<1x128xf32>
    %11 = vector.broadcast %10 : vector<1x128xf32> to vector<8x128xf32>
    %12 = arith.addf %9, %11 : vector<8x128xf32>
    %cst_11 = arith.constant 0.000000e+00 : f32
    %13 = vector.broadcast %cst_11 : f32 to vector<8x128xf32>
    %14 = arith.maximumf %12, %13 : vector<8x128xf32>
    %c0_12 = arith.constant 0 : index
    %c0_13 = arith.constant 0 : index
    %15 = vector.load %arg6[%c0_12, %c0_13] : memref<128x128xf32, #tpu.memory_space<vmem>>, vector<128x128xf32>
    %cst_14 = arith.constant dense<0.000000e+00> : vector<8x128xf32>
    %16 = tpu.matmul %14, %15, %cst_14 {dimension_numbers = #tpu.dot_dimension_numbers<[1], [0], [0], [1], [0, 0, 1, 1], [], []>} : vector<8x128xf32>, vector<128x128xf32>, vector<8x128xf32> -> vector<8x128xf32>
    %c0_15 = arith.constant 0 : index
    %c0_16 = arith.constant 0 : index
    %17 = vector.load %arg7[%c0_15, %c0_16] : memref<1x128xf32, #tpu.memory_space<vmem>>, vector<1x128xf32>
    %18 = vector.broadcast %17 : vector<1x128xf32> to vector<8x128xf32>
    %19 = arith.addf %16, %18 : vector<8x128xf32>
    %cst_17 = arith.constant 0.000000e+00 : f32
    %20 = vector.broadcast %cst_17 : f32 to vector<8x128xf32>
    %21 = arith.maximumf %19, %20 : vector<8x128xf32>
    %c0_18 = arith.constant 0 : index
    %c0_19 = arith.constant 0 : index
    %22 = vector.load %arg8[%c0_18, %c0_19] : memref<128x128xf32, #tpu.memory_space<vmem>>, vector<128x128xf32>
    %cst_20 = arith.constant dense<0.000000e+00> : vector<8x128xf32>
    %23 = tpu.matmul %21, %22, %cst_20 {dimension_numbers = #tpu.dot_dimension_numbers<[1], [0], [0], [1], [0, 0, 1, 1], [], []>} : vector<8x128xf32>, vector<128x128xf32>, vector<8x128xf32> -> vector<8x128xf32>
    %c0_21 = arith.constant 0 : index
    %c0_22 = arith.constant 0 : index
    %24 = vector.load %arg9[%c0_21, %c0_22] : memref<1x128xf32, #tpu.memory_space<vmem>>, vector<1x128xf32>
    %25 = vector.broadcast %24 : vector<1x128xf32> to vector<8x128xf32>
    %26 = arith.addf %23, %25 : vector<8x128xf32>
    %27 = arith.negf %26 : vector<8x128xf32>
    %28 = math.exp %27 : vector<8x128xf32>
    %cst_23 = arith.constant 1.000000e+00 : f32
    %29 = vector.broadcast %cst_23 : f32 to vector<8x128xf32>
    %30 = arith.addf %29, %28 : vector<8x128xf32>
    %31 = arith.divf %29, %30 : vector<8x128xf32>
    %c0_24 = arith.constant 0 : index
    %c0_25 = arith.constant 0 : index
    %32 = vector.load %arg10[%c0_24, %c0_25] : memref<128x128xf32, #tpu.memory_space<vmem>>, vector<128x128xf32>
    %cst_26 = arith.constant dense<0.000000e+00> : vector<8x128xf32>
    %33 = tpu.matmul %31, %32, %cst_26 {dimension_numbers = #tpu.dot_dimension_numbers<[1], [0], [0], [1], [0, 0, 1, 1], [], []>} : vector<8x128xf32>, vector<128x128xf32>, vector<8x128xf32> -> vector<8x128xf32>
    %cst_27 = arith.constant 0.000000e+00 : f32
    %34 = vector.broadcast %cst_27 : f32 to vector<8x128xf32>
    %35 = arith.cmpf ogt, %33, %34 : vector<8x128xf32>
    %cst_28 = arith.constant 9.99999996E-13 : f32
    %36 = vector.broadcast %cst_28 : f32 to vector<8x128xf32>
    %37 = arith.maximumf %33, %36 : vector<8x128xf32>
    %cst_29 = arith.constant 1.000000e+00 : f32
    %38 = vector.broadcast %cst_29 : f32 to vector<8x128xf32>
    %39 = arith.select %35, %37, %38 : vector<8x128xi1>, vector<8x128xf32>
    %40 = tpu.reciprocal %39 : vector<8x128xf32> -> vector<8x128xf32>
    %41 = arith.mulf %31, %40 : vector<8x128xf32>
    %c0_30 = arith.constant 0 : index
    %c0_31 = arith.constant 0 : index
    %42 = vector.load %arg11[%c0_30, %c0_31] : memref<8x128xf32, #tpu.memory_space<vmem>>, vector<8x128xf32>
    tpu.vector_store %arg11[%c0_30, %c0_31], %41 {strides = array<i32>} : memref<8x128xf32, #tpu.memory_space<vmem>>, vector<8x128xf32>,
    return
  }
  func.func @transform_0(%arg0: i32) -> (i32, i32) {
    %c0_i32 = arith.constant 0 : i32
    %c0_i32_0 = arith.constant 0 : i32
    return %arg0, %c0_i32 : i32, i32
  }
  func.func @transform_1(%arg0: i32) -> (i32, i32) {
    %c0_i32 = arith.constant 0 : i32
    %c0_i32_0 = arith.constant 0 : i32
    %c0_i32_1 = arith.constant 0 : i32
    return %c0_i32, %c0_i32_0 : i32, i32
  }
  func.func @transform_2(%arg0: i32) -> (i32, i32) {
    %c0_i32 = arith.constant 0 : i32
    %c0_i32_0 = arith.constant 0 : i32
    %c0_i32_1 = arith.constant 0 : i32
    return %c0_i32, %c0_i32_0 : i32, i32
  }
  func.func @transform_3(%arg0: i32) -> (i32, i32) {
    %c0_i32 = arith.constant 0 : i32
    %c0_i32_0 = arith.constant 0 : i32
    %c0_i32_1 = arith.constant 0 : i32
    return %c0_i32, %c0_i32_0 : i32, i32
  }
  func.func @transform_4(%arg0: i32) -> (i32, i32) {
    %c0_i32 = arith.constant 0 : i32
    %c0_i32_0 = arith.constant 0 : i32
    %c0_i32_1 = arith.constant 0 : i32
    return %c0_i32, %c0_i32_0 : i32, i32
  }
  func.func @transform_5(%arg0: i32) -> (i32, i32) {
    %c0_i32 = arith.constant 0 : i32
    %c0_i32_0 = arith.constant 0 : i32
    %c0_i32_1 = arith.constant 0 : i32
    return %c0_i32, %c0_i32_0 : i32, i32
  }
  func.func @transform_6(%arg0: i32) -> (i32, i32) {
    %c0_i32 = arith.constant 0 : i32
    %c0_i32_0 = arith.constant 0 : i32
    %c0_i32_1 = arith.constant 0 : i32
    return %c0_i32, %c0_i32_0 : i32, i32
  }
  func.func @transform_7(%arg0: i32) -> (i32, i32) {
    %c0_i32 = arith.constant 0 : i32
    %c0_i32_0 = arith.constant 0 : i32
    %c0_i32_1 = arith.constant 0 : i32
    return %c0_i32, %c0_i32_0 : i32, i32
  }
  func.func @transform_8(%arg0: i32) -> (i32, i32) {
    %c0_i32 = arith.constant 0 : i32
    %c0_i32_0 = arith.constant 0 : i32
    %c0_i32_1 = arith.constant 0 : i32
    return %c0_i32, %c0_i32_0 : i32, i32
  }
  func.func @transform_9(%arg0: i32) -> (i32, i32) {
    %c0_i32 = arith.constant 0 : i32
    %c0_i32_0 = arith.constant 0 : i32
    %c0_i32_1 = arith.constant 0 : i32
    return %c0_i32, %c0_i32_0 : i32, i32
  }
  func.func @transform_10(%arg0: i32) -> (i32, i32) {
    %c0_i32 = arith.constant 0 : i32
    %c0_i32_0 = arith.constant 0 : i32
    return %arg0, %c0_i32 : i32, i32
  }
}

</mosaic_0001>

<llo_original>
// kernel: seq2seq_policy_forward.1
$region0: #{seq2seq_policy_forward.1}
  #allocation0 [shape = 'u32[]', space=smem, size = 0x4, offset = 0x4, fixed_abs, tag = 'smem constant byte address 0x4 - core index']
  #allocation1 [shape = 'u32[144,128]{1,0:T(1,128)}', space=vmem, size = 0x12000, scoped, tag = 'internal scratch']
  %s0 = inlined_call_operand.vmem [shape: f32[8,128], index: 0, kind: input, shape index: {}]
  %s1 = inlined_call_operand.vmem [shape: f32[128,128], index: 1, kind: input, shape index: {}]
  %s2 = inlined_call_operand.vmem [shape: f32[1,128], index: 2, kind: input, shape index: {}]
  %s3 = inlined_call_operand.hbm [shape: f32[128,128], index: 3, kind: input, shape index: {}]
  %s4 = inlined_call_operand.vmem [shape: f32[1,128], index: 4, kind: input, shape index: {}]
  %s5 = inlined_call_operand.hbm [shape: f32[128,128], index: 5, kind: input, shape index: {}]
  %s6 = inlined_call_operand.vmem [shape: f32[1,128], index: 6, kind: input, shape index: {}]
  %s7 = inlined_call_operand.hbm [shape: f32[128,128], index: 7, kind: input, shape index: {}]
  %s8 = inlined_call_operand.vmem [shape: f32[1,128], index: 8, kind: input, shape index: {}]
  %s9 = inlined_call_operand.hbm [shape: f32[128,128], index: 9, kind: input, shape index: {}]
  %s10 = inlined_call_operand.vmem [shape: f32[8,128], index: 10, kind: output, shape index: {}]
  %s11 = sld [smem:[#allocation0]]
  $region66: #{seq2seq_policy_forward.1} parent=0
    _
  %s13 = ssub.s32 1, %s11
  %s14 = scalar_select 0, %s13, %s11
  $region1: #{seq2seq_policy_forward.1} parent=0
    #allocation2 [shape = 'u8[65536]{0}', space=vmem, size = 0x10000, scoped, tag = 'input window, operand 3, single buffered']
    #allocation3 [shape = 's32[1]{0}', space=sflag, size = 0x4, scoped, tag = 'scoped memory for seq2seq_policy_forward.1']
    #allocation4 [shape = 'u8[65536]{0}', space=vmem, size = 0x10000, scoped, tag = 'input window, operand 5, single buffered']
    #allocation5 [shape = 's32[1]{0}', space=sflag, size = 0x4, scoped, tag = 'scoped memory for seq2seq_policy_forward.1']
    #allocation6 [shape = 'u8[65536]{0}', space=vmem, size = 0x10000, scoped, tag = 'input window, operand 7, single buffered']
    #allocation7 [shape = 'u8[65536]{0}', space=vmem, size = 0x10000, scoped, tag = 'input window, operand 9, single buffered']
    #allocation8 [shape = 's32[1]{0}', space=sflag, size = 0x4, scoped, tag = 'scoped memory for seq2seq_policy_forward.1']
    %15 = vsyncpa [#allocation3], 0
    %16 = vsyncpa [#allocation5], 0
    %17 = vsyncpa [#allocation8], 0
    // Predicated region
    $region2: #{seq2seq_policy_forward.1} parent=1 // pred_check
      _
    $region3: #{seq2seq_policy_forward.1} parent=1 // pred_check_branch
      %19 = sbr.rel (0) target = $region5
    $region4: #{seq2seq_policy_forward.1} parent=1 // pred_region
      _
    $region5: #{seq2seq_policy_forward.1} parent=1 // pred_fallthru
      _
    // Predicated region
    $region6: #{seq2seq_policy_forward.1} parent=1 // pred_check
      _
    $region7: #{seq2seq_policy_forward.1} parent=1 // pred_check_branch
      %21 = sbr.rel (0) target = $region9
    $region8: #{seq2seq_policy_forward.1} parent=1 // pred_region
      _
    $region9: #{seq2seq_policy_forward.1} parent=1 // pred_fallthru
      _
    // Predicated region
    $region10: #{seq2seq_policy_forward.1} parent=1 // pred_check
      _
    $region11: #{seq2seq_policy_forward.1} parent=1 // pred_check_branch
      %23 = sbr.rel (0) target = $region13
    $region12: #{seq2seq_policy_forward.1} parent=1 // pred_region
      _
    $region13: #{seq2seq_policy_forward.1} parent=1 // pred_fallthru
      _
    // Predicated region
    $region14: #{seq2seq_policy_forward.1} parent=1 // pred_check
      _
    $region15: #{seq2seq_policy_forward.1} parent=1 // pred_check_branch
      %25 = sbr.rel (0) target = $region17
    $region16: #{seq2seq_policy_forward.1} parent=1 // pred_region
      %s27 = ssub.s32 2048, 2048
      %28 = vsyncadd [#allocation3], %s27
      %s29 = sshll.u32 [#allocation2], 4
      %s30 = int_to_ptr.vmem [resolvable:$true] %s29
      %35 = dma.hbm_to_vmem [thread:$0]  %s3, 2048, %s30, [#allocation3], 128, 128, 8
    $region17: #{seq2seq_policy_forward.1} parent=1 // pred_fallthru
      _
    // Predicated region
    $region18: #{seq2seq_policy_forward.1} parent=1 // pred_check
      _
    $region19: #{seq2seq_policy_forward.1} parent=1 // pred_check_branch
      %37 = sbr.rel (0) target = $region21
    $region20: #{seq2seq_policy_forward.1} parent=1 // pred_region
      _
    $region21: #{seq2seq_policy_forward.1} parent=1 // pred_fallthru
      _
    // Predicated region
    $region22: #{seq2seq_policy_forward.1} parent=1 // pred_check
      _
    $region23: #{seq2seq_policy_forward.1} parent=1 // pred_check_branch
      %39 = sbr.rel (0) target = $region25
    $region24: #{seq2seq_policy_forward.1} parent=1 // pred_region
      %s41 = ssub.s32 2048, 2048
      %42 = vsyncadd [#allocation5], %s41
      %s43 = sshll.u32 [#allocation4], 4
      %s44 = int_to_ptr.vmem [resolvable:$true] %s43
      %49 = dma.hbm_to_vmem [thread:$0]  %s5, 2048, %s44, [#allocation5], 128, 128, 8
    $region25: #{seq2seq_policy_forward.1} parent=1 // pred_fallthru
      _
    // Predicated region
    $region26: #{seq2seq_policy_forward.1} parent=1 // pred_check
      _
    $region27: #{seq2seq_policy_forward.1} parent=1 // pred_check_branch
      %51 = sbr.rel (0) target = $region29
    $region28: #{seq2seq_policy_forward.1} parent=1 // pred_region
      _
    $region29: #{seq2seq_policy_forward.1} parent=1 // pred_fallthru
      _
    // Predicated region
    $region30: #{seq2seq_policy_forward.1} parent=1 // pred_check
      _
    $region31: #{seq2seq_policy_forward.1} parent=1 // pred_check_branch
      %53 = sbr.rel (0) target = $region33
    $region32: #{seq2seq_policy_forward.1} parent=1 // pred_region
      %s55 = ssub.s32 2048, 2048
      %56 = vsyncadd [#allocation5], %s55
      %s57 = sshll.u32 [#allocation6], 4
      %s58 = int_to_ptr.vmem [resolvable:$true] %s57
      %63 = dma.hbm_to_vmem [thread:$0]  %s7, 2048, %s58, [#allocation5], 128, 128, 8
    $region33: #{seq2seq_policy_forward.1} parent=1 // pred_fallthru
      _
    // Predicated region
    $region34: #{seq2seq_policy_forward.1} parent=1 // pred_check
      _
    $region35: #{seq2seq_policy_forward.1} parent=1 // pred_check_branch
      %65 = sbr.rel (0) target = $region37
    $region36: #{seq2seq_policy_forward.1} parent=1 // pred_region
      _
    $region37: #{seq2seq_policy_forward.1} parent=1 // pred_fallthru
      _
    // Predicated region
    $region38: #{seq2seq_policy_forward.1} parent=1 // pred_check
      _
    $region39: #{seq2seq_policy_forward.1} parent=1 // pred_check_branch
      %67 = sbr.rel (0) target = $region41
    $region40: #{seq2seq_policy_forward.1} parent=1 // pred_region
      %s69 = ssub.s32 2048, 2048
      %70 = vsyncadd [#allocation8], %s69
      %s71 = sshll.u32 [#allocation7], 4
      %s72 = int_to_ptr.vmem [resolvable:$true] %s71
      %77 = dma.hbm_to_vmem [thread:$0]  %s9, 2048, %s72, [#allocation8], 128, 128, 8
    $region41: #{seq2seq_policy_forward.1} parent=1 // pred_fallthru
      _
    // Predicated region
    $region42: #{seq2seq_policy_forward.1} parent=1 // pred_check
      _
    $region43: #{seq2seq_policy_forward.1} parent=1 // pred_check_branch
      %79 = sbr.rel (0) target = $region45
    $region44: #{seq2seq_policy_forward.1} parent=1 // pred_region
      %80 = dma.done [#allocation3], 2048
    $region45: #{seq2seq_policy_forward.1} parent=1 // pred_fallthru
      _
    // Predicated region
    $region46: #{seq2seq_policy_forward.1} parent=1 // pred_check
      _
    $region47: #{seq2seq_policy_forward.1} parent=1 // pred_check_branch
      %82 = sbr.rel (0) target = $region49
    $region48: #{seq2seq_policy_forward.1} parent=1 // pred_region
      %83 = dma.done [#allocation5], 2048
    $region49: #{seq2seq_policy_forward.1} parent=1 // pred_fallthru
      _
    // Predicated region
    $region50: #{seq2seq_policy_forward.1} parent=1 // pred_check
      _
    $region51: #{seq2seq_policy_forward.1} parent=1 // pred_check_branch
      %85 = sbr.rel (0) target = $region53
    $region52: #{seq2seq_policy_forward.1} parent=1 // pred_region
      %86 = dma.done [#allocation5], 2048
    $region53: #{seq2seq_policy_forward.1} parent=1 // pred_fallthru
      _
    // Predicated region
    $region54: #{seq2seq_policy_forward.1} parent=1 // pred_check
      _
    $region55: #{seq2seq_policy_forward.1} parent=1 // pred_check_branch
      %88 = sbr.rel (0) target = $region57
    $region56: #{seq2seq_policy_forward.1} parent=1 // pred_region
      %89 = dma.done [#allocation8], 2048
    $region57: #{seq2seq_policy_forward.1} parent=1 // pred_fallthru
      _
    %v90 = vld [vmem:[%s0] sm:$0xff]
    %v91 = vld [vmem:[%s1] sm:$0xff]
    %v92 = vld [vmem:[%s1 + $0x8] sm:$0xff]
    %v93 = vld [vmem:[%s1 + $0x10] sm:$0xff]
    %v94 = vld [vmem:[%s1 + $0x18] sm:$0xff]
    %v95 = vld [vmem:[%s1 + $0x20] sm:$0xff]
    %v96 = vld [vmem:[%s1 + $0x28] sm:$0xff]
    %v97 = vld [vmem:[%s1 + $0x30] sm:$0xff]
    %v98 = vld [vmem:[%s1 + $0x38] sm:$0xff]
    %v99 = vld [vmem:[%s1 + $0x40] sm:$0xff]
    %v100 = vld [vmem:[%s1 + $0x48] sm:$0xff]
    %v101 = vld [vmem:[%s1 + $0x50] sm:$0xff]
    %v102 = vld [vmem:[%s1 + $0x58] sm:$0xff]
    %v103 = vld [vmem:[%s1 + $0x60] sm:$0xff]
    %v104 = vld [vmem:[%s1 + $0x68] sm:$0xff]
    %v105 = vld [vmem:[%s1 + $0x70] sm:$0xff]
    %v106 = vld [vmem:[%s1 + $0x78] sm:$0xff]
    %v107 = vld [vmem:[%s2] sm:$0x1]
    %v109 = vlaneseq
    %v110 = vshrl.u32 %v109, 7
    %v111 = vsub.s32 0, %v110
    %v112 = vrot.slane %v107, %v111
    %114 = vmatprep.subr.mxu0 0.0
    %115 = vmatpush1.msra.mxu0 %v91
    %116 = vmatprep.subr.mxu0 0.0
    %117 = vmatpush1.msra.mxu0 %v92
    %118 = vmatprep.subr.mxu0 0.0
    %119 = vmatpush1.msra.mxu0 %v93
    %120 = vmatprep.subr.mxu0 0.0
    %121 = vmatpush1.msra.mxu0 %v94
    %122 = vmatprep.subr.mxu0 0.0
    %123 = vmatpush1.msra.mxu0 %v95
    %124 = vmatprep.subr.mxu0 0.0
    %125 = vmatpush1.msra.mxu0 %v96
    %126 = vmatprep.subr.mxu0 0.0
    %127 = vmatpush1.msra.mxu0 %v97
    %128 = vmatprep.subr.mxu0 0.0
    %129 = vmatpush1.msra.mxu0 %v98
    %130 = vmatprep.subr.mxu0 0.0
    %131 = vmatpush1.msra.mxu0 %v99
    %132 = vmatprep.subr.mxu0 0.0
    %133 = vmatpush1.msra.mxu0 %v100
    %134 = vmatprep.subr.mxu0 0.0
    %135 = vmatpush1.msra.mxu0 %v101
    %136 = vmatprep.subr.mxu0 0.0
    %137 = vmatpush1.msra.mxu0 %v102
    %138 = vmatprep.subr.mxu0 0.0
    %139 = vmatpush1.msra.mxu0 %v103
    %140 = vmatprep.subr.mxu0 0.0
    %141 = vmatpush1.msra.mxu0 %v104
    %142 = vmatprep.subr.mxu0 0.0
    %143 = vmatpush1.msra.mxu0 %v105
    %144 = vmatprep.subr.mxu0 0.0
    %145 = vmatpush1.msra.mxu0 %v106
    %146 = vmatprep.subr.mxu0 0.0
    %147 = vmatpush1.msra.mxu0 0.0
    %148 = vmatprep.subr.mxu0 0.0
    %149 = vmatpush1.msra.mxu0 0.0
    %150 = vmatprep.subr.mxu0 0.0
    %151 = vmatpush1.msra.mxu0 0.0
    %152 = vmatprep.subr.mxu0 0.0
    %153 = vmatpush1.msra.mxu0 0.0
    %154 = vmatprep.subr.mxu0 0.0
    %155 = vmatpush1.msra.mxu0 0.0
    %156 = vmatprep.subr.mxu0 0.0
    %157 = vmatpush1.msra.mxu0 0.0
    %158 = vmatprep.subr.mxu0 0.0
    %159 = vmatpush1.msra.mxu0 0.0
    %160 = vmatprep.subr.mxu0 0.0
    %161 = vmatpush1.msra.mxu0 0.0
    %162 = vmatprep.subr.mxu0 0.0
    %163 = vmatpush1.msra.mxu0 0.0
    %164 = vmatprep.subr.mxu0 0.0
    %165 = vmatpush1.msra.mxu0 0.0
    %166 = vmatprep.subr.mxu0 0.0
    %167 = vmatpush1.msra.mxu0 0.0
    %168 = vmatprep.subr.mxu0 0.0
    %169 = vmatpush1.msra.mxu0 0.0
    %170 = vmatprep.subr.mxu0 0.0
    %171 = vmatpush1.msra.mxu0 0.0
    %172 = vmatprep.subr.mxu0 0.0
    %173 = vmatpush1.msra.mxu0 0.0
    %174 = vmatprep.subr.mxu0 0.0
    %175 = vmatpush1.msra.mxu0 0.0
    %176 = vmatprep.subr.mxu0 0.0
    %177 = vmatpush1.msra.mxu0 0.0
    %178 = vmatprep.mubr.f32.mxu0 0.0
    %179 = vmatmul.mubr.f32.gmra.mrb[0].mxu0 %v90
    %v180 = vpop.f32.mrb[0].mxu0
    %v181 = vadd.f32 %v112, %v180
    %v182 = vpop.f32.mrb[0].mxu0
    %183 = vdwg.mxu0
    %v184 = vmax.f32 %v181, 0.0
    %v185 = vld [vmem:[#allocation2] sm:$0xff]
    %v186 = vld [vmem:[#allocation2 + $0x8] sm:$0xff]
    %v187 = vld [vmem:[#allocation2 + $0x10] sm:$0xff]
    %v188 = vld [vmem:[#allocation2 + $0x18] sm:$0xff]
    %v189 = vld [vmem:[#allocation2 + $0x20] sm:$0xff]
    %v190 = vld [vmem:[#allocation2 + $0x28] sm:$0xff]
    %v191 = vld [vmem:[#allocation2 + $0x30] sm:$0xff]
    %v192 = vld [vmem:[#allocation2 + $0x38] sm:$0xff]
    %v193 = vld [vmem:[#allocation2 + $0x40] sm:$0xff]
    %v194 = vld [vmem:[#allocation2 + $0x48] sm:$0xff]
    %v195 = vld [vmem:[#allocation2 + $0x50] sm:$0xff]
    %v196 = vld [vmem:[#allocation2 + $0x58] sm:$0xff]
    %v197 = vld [vmem:[#allocation2 + $0x60] sm:$0xff]
    %v198 = vld [vmem:[#allocation2 + $0x68] sm:$0xff]
    %v199 = vld [vmem:[#allocation2 + $0x70] sm:$0xff]
    %v200 = vld [vmem:[#allocation2 + $0x78] sm:$0xff]
    %v201 = vld [vmem:[%s4] sm:$0x1]
    %v203 = vlaneseq
    %v204 = vshrl.u32 %v203, 7
    %v205 = vsub.s32 0, %v204
    %v206 = vrot.slane %v201, %v205
    %208 = vmatprep.subr.mxu0 0.0
    %209 = vmatpush1.msra.mxu0 %v185
    %210 = vmatprep.subr.mxu0 0.0
    %211 = vmatpush1.msra.mxu0 %v186
    %212 = vmatprep.subr.mxu0 0.0
    %213 = vmatpush1.msra.mxu0 %v187
    %214 = vmatprep.subr.mxu0 0.0
    %215 = vmatpush1.msra.mxu0 %v188
    %216 = vmatprep.subr.mxu0 0.0
    %217 = vmatpush1.msra.mxu0 %v189
    %218 = vmatprep.subr.mxu0 0.0
    %219 = vmatpush1.msra.mxu0 %v190
    %220 = vmatprep.subr.mxu0 0.0
    %221 = vmatpush1.msra.mxu0 %v191
    %222 = vmatprep.subr.mxu0 0.0
    %223 = vmatpush1.msra.mxu0 %v192
    %224 = vmatprep.subr.mxu0 0.0
    %225 = vmatpush1.msra.mxu0 %v193
    %226 = vmatprep.subr.mxu0 0.0
    %227 = vmatpush1.msra.mxu0 %v194
    %228 = vmatprep.subr.mxu0 0.0
    %229 = vmatpush1.msra.mxu0 %v195
    %230 = vmatprep.subr.mxu0 0.0
    %231 = vmatpush1.msra.mxu0 %v196
    %232 = vmatprep.subr.mxu0 0.0
    %233 = vmatpush1.msra.mxu0 %v197
    %234 = vmatprep.subr.mxu0 0.0
    %235 = vmatpush1.msra.mxu0 %v198
    %236 = vmatprep.subr.mxu0 0.0
    %237 = vmatpush1.msra.mxu0 %v199
    %238 = vmatprep.subr.mxu0 0.0
    %239 = vmatpush1.msra.mxu0 %v200
    %240 = vmatprep.subr.mxu0 0.0
    %241 = vmatpush1.msra.mxu0 0.0
    %242 = vmatprep.subr.mxu0 0.0
    %243 = vmatpush1.msra.mxu0 0.0
    %244 = vmatprep.subr.mxu0 0.0
    %245 = vmatpush1.msra.mxu0 0.0
    %246 = vmatprep.subr.mxu0 0.0
    %247 = vmatpush1.msra.mxu0 0.0
    %248 = vmatprep.subr.mxu0 0.0
    %249 = vmatpush1.msra.mxu0 0.0
    %250 = vmatprep.subr.mxu0 0.0
    %251 = vmatpush1.msra.mxu0 0.0
    %252 = vmatprep.subr.mxu0 0.0
    %253 = vmatpush1.msra.mxu0 0.0
    %254 = vmatprep.subr.mxu0 0.0
    %255 = vmatpush1.msra.mxu0 0.0
    %256 = vmatprep.subr.mxu0 0.0
    %257 = vmatpush1.msra.mxu0 0.0
    %258 = vmatprep.subr.mxu0 0.0
    %259 = vmatpush1.msra.mxu0 0.0
    %260 = vmatprep.subr.mxu0 0.0
    %261 = vmatpush1.msra.mxu0 0.0
    %262 = vmatprep.subr.mxu0 0.0
    %263 = vmatpush1.msra.mxu0 0.0
    %264 = vmatprep.subr.mxu0 0.0
    %265 = vmatpush1.msra.mxu0 0.0
    %266 = vmatprep.subr.mxu0 0.0
    %267 = vmatpush1.msra.mxu0 0.0
    %268 = vmatprep.subr.mxu0 0.0
    %269 = vmatpush1.msra.mxu0 0.0
    %270 = vmatprep.subr.mxu0 0.0
    %271 = vmatpush1.msra.mxu0 0.0
    %272 = vmatprep.mubr.f32.mxu0 0.0
    %273 = vmatmul.mubr.f32.gmra.mrb[0].mxu0 %v184
    %v274 = vpop.f32.mrb[0].mxu0
    %v275 = vadd.f32 %v206, %v274
    %v276 = vpop.f32.mrb[0].mxu0
    %277 = vdwg.mxu0
    %v278 = vmax.f32 %v275, 0.0
    %v279 = vld [vmem:[#allocation4] sm:$0xff]
    %v280 = vld [vmem:[#allocation4 + $0x8] sm:$0xff]
    %v281 = vld [vmem:[#allocation4 + $0x10] sm:$0xff]
    %v282 = vld [vmem:[#allocation4 + $0x18] sm:$0xff]
    %v283 = vld [vmem:[#allocation4 + $0x20] sm:$0xff]
    %v284 = vld [vmem:[#allocation4 + $0x28] sm:$0xff]
    %v285 = vld [vmem:[#allocation4 + $0x30] sm:$0xff]
    %v286 = vld [vmem:[#allocation4 + $0x38] sm:$0xff]
    %v287 = vld [vmem:[#allocation4 + $0x40] sm:$0xff]
    %v288 = vld [vmem:[#allocation4 + $0x48] sm:$0xff]
    %v289 = vld [vmem:[#allocation4 + $0x50] sm:$0xff]
    %v290 = vld [vmem:[#allocation4 + $0x58] sm:$0xff]
    %v291 = vld [vmem:[#allocation4 + $0x60] sm:$0xff]
    %v292 = vld [vmem:[#allocation4 + $0x68] sm:$0xff]
    %v293 = vld [vmem:[#allocation4 + $0x70] sm:$0xff]
    %v294 = vld [vmem:[#allocation4 + $0x78] sm:$0xff]
    %v295 = vld [vmem:[%s6] sm:$0x1]
    %v297 = vlaneseq
    %v298 = vshrl.u32 %v297, 7
    %v299 = vsub.s32 0, %v298
    %v300 = vrot.slane %v295, %v299
    %302 = vmatprep.subr.mxu0 0.0
    %303 = vmatpush1.msra.mxu0 %v279
    %304 = vmatprep.subr.mxu0 0.0
    %305 = vmatpush1.msra.mxu0 %v280
    %306 = vmatprep.subr.mxu0 0.0
    %307 = vmatpush1.msra.mxu0 %v281
    %308 = vmatprep.subr.mxu0 0.0
    %309 = vmatpush1.msra.mxu0 %v282
    %310 = vmatprep.subr.mxu0 0.0
    %311 = vmatpush1.msra.mxu0 %v283
    %312 = vmatprep.subr.mxu0 0.0
    %313 = vmatpush1.msra.mxu0 %v284
    %314 = vmatprep.subr.mxu0 0.0
    %315 = vmatpush1.msra.mxu0 %v285
    %316 = vmatprep.subr.mxu0 0.0
    %317 = vmatpush1.msra.mxu0 %v286
    %318 = vmatprep.subr.mxu0 0.0
    %319 = vmatpush1.msra.mxu0 %v287
    %320 = vmatprep.subr.mxu0 0.0
    %321 = vmatpush1.msra.mxu0 %v288
    %322 = vmatprep.subr.mxu0 0.0
    %323 = vmatpush1.msra.mxu0 %v289
    %324 = vmatprep.subr.mxu0 0.0
    %325 = vmatpush1.msra.mxu0 %v290
    %326 = vmatprep.subr.mxu0 0.0
    %327 = vmatpush1.msra.mxu0 %v291
    %328 = vmatprep.subr.mxu0 0.0
    %329 = vmatpush1.msra.mxu0 %v292
    %330 = vmatprep.subr.mxu0 0.0
    %331 = vmatpush1.msra.mxu0 %v293
    %332 = vmatprep.subr.mxu0 0.0
    %333 = vmatpush1.msra.mxu0 %v294
    %334 = vmatprep.subr.mxu0 0.0
    %335 = vmatpush1.msra.mxu0 0.0
    %336 = vmatprep.subr.mxu0 0.0
    %337 = vmatpush1.msra.mxu0 0.0
    %338 = vmatprep.subr.mxu0 0.0
    %339 = vmatpush1.msra.mxu0 0.0
    %340 = vmatprep.subr.mxu0 0.0
    %341 = vmatpush1.msra.mxu0 0.0
    %342 = vmatprep.subr.mxu0 0.0
    %343 = vmatpush1.msra.mxu0 0.0
    %344 = vmatprep.subr.mxu0 0.0
    %345 = vmatpush1.msra.mxu0 0.0
    %346 = vmatprep.subr.mxu0 0.0
    %347 = vmatpush1.msra.mxu0 0.0
    %348 = vmatprep.subr.mxu0 0.0
    %349 = vmatpush1.msra.mxu0 0.0
    %350 = vmatprep.subr.mxu0 0.0
    %351 = vmatpush1.msra.mxu0 0.0
    %352 = vmatprep.subr.mxu0 0.0
    %353 = vmatpush1.msra.mxu0 0.0
    %354 = vmatprep.subr.mxu0 0.0
    %355 = vmatpush1.msra.mxu0 0.0
    %356 = vmatprep.subr.mxu0 0.0
    %357 = vmatpush1.msra.mxu0 0.0
    %358 = vmatprep.subr.mxu0 0.0
    %359 = vmatpush1.msra.mxu0 0.0
    %360 = vmatprep.subr.mxu0 0.0
    %361 = vmatpush1.msra.mxu0 0.0
    %362 = vmatprep.subr.mxu0 0.0
    %363 = vmatpush1.msra.mxu0 0.0
    %364 = vmatprep.subr.mxu0 0.0
    %365 = vmatpush1.msra.mxu0 0.0
    %366 = vmatprep.mubr.f32.mxu0 0.0
    %367 = vmatmul.mubr.f32.gmra.mrb[0].mxu0 %v278
    %v368 = vpop.f32.mrb[0].mxu0
    %v369 = vadd.f32 %v300, %v368
    %v370 = vpop.f32.mrb[0].mxu0
    %371 = vdwg.mxu0
    %v372 = vmax.f32 %v369, 0.0
    %v373 = vld [vmem:[#allocation6] sm:$0xff]
    %v374 = vld [vmem:[#allocation6 + $0x8] sm:$0xff]
    %v375 = vld [vmem:[#allocation6 + $0x10] sm:$0xff]
    %v376 = vld [vmem:[#allocation6 + $0x18] sm:$0xff]
    %v377 = vld [vmem:[#allocation6 + $0x20] sm:$0xff]
    %v378 = vld [vmem:[#allocation6 + $0x28] sm:$0xff]
    %v379 = vld [vmem:[#allocation6 + $0x30] sm:$0xff]
    %v380 = vld [vmem:[#allocation6 + $0x38] sm:$0xff]
    %v381 = vld [vmem:[#allocation6 + $0x40] sm:$0xff]
    %v382 = vld [vmem:[#allocation6 + $0x48] sm:$0xff]
    %v383 = vld [vmem:[#allocation6 + $0x50] sm:$0xff]
    %v384 = vld [vmem:[#allocation6 + $0x58] sm:$0xff]
    %v385 = vld [vmem:[#allocation6 + $0x60] sm:$0xff]
    %v386 = vld [vmem:[#allocation6 + $0x68] sm:$0xff]
    %v387 = vld [vmem:[#allocation6 + $0x70] sm:$0xff]
    %v388 = vld [vmem:[#allocation6 + $0x78] sm:$0xff]
    %v389 = vld [vmem:[%s8] sm:$0x1]
    %v391 = vlaneseq
    %v392 = vshrl.u32 %v391, 7
    %v393 = vsub.s32 0, %v392
    %v394 = vrot.slane %v389, %v393
    %396 = vmatprep.subr.mxu0 0.0
    %397 = vmatpush1.msra.mxu0 %v373
    %398 = vmatprep.subr.mxu0 0.0
    %399 = vmatpush1.msra.mxu0 %v374
    %400 = vmatprep.subr.mxu0 0.0
    %401 = vmatpush1.msra.mxu0 %v375
    %402 = vmatprep.subr.mxu0 0.0
    %403 = vmatpush1.msra.mxu0 %v376
    %404 = vmatprep.subr.mxu0 0.0
    %405 = vmatpush1.msra.mxu0 %v377
    %406 = vmatprep.subr.mxu0 0.0
    %407 = vmatpush1.msra.mxu0 %v378
    %408 = vmatprep.subr.mxu0 0.0
    %409 = vmatpush1.msra.mxu0 %v379
    %410 = vmatprep.subr.mxu0 0.0
    %411 = vmatpush1.msra.mxu0 %v380
    %412 = vmatprep.subr.mxu0 0.0
    %413 = vmatpush1.msra.mxu0 %v381
    %414 = vmatprep.subr.mxu0 0.0
    %415 = vmatpush1.msra.mxu0 %v382
    %416 = vmatprep.subr.mxu0 0.0
    %417 = vmatpush1.msra.mxu0 %v383
    %418 = vmatprep.subr.mxu0 0.0
    %419 = vmatpush1.msra.mxu0 %v384
    %420 = vmatprep.subr.mxu0 0.0
    %421 = vmatpush1.msra.mxu0 %v385
    %422 = vmatprep.subr.mxu0 0.0
    %423 = vmatpush1.msra.mxu0 %v386
    %424 = vmatprep.subr.mxu0 0.0
    %425 = vmatpush1.msra.mxu0 %v387
    %426 = vmatprep.subr.mxu0 0.0
    %427 = vmatpush1.msra.mxu0 %v388
    %428 = vmatprep.subr.mxu0 0.0
    %429 = vmatpush1.msra.mxu0 0.0
    %430 = vmatprep.subr.mxu0 0.0
    %431 = vmatpush1.msra.mxu0 0.0
    %432 = vmatprep.subr.mxu0 0.0
    %433 = vmatpush1.msra.mxu0 0.0
    %434 = vmatprep.subr.mxu0 0.0
    %435 = vmatpush1.msra.mxu0 0.0
    %436 = vmatprep.subr.mxu0 0.0
    %437 = vmatpush1.msra.mxu0 0.0
    %438 = vmatprep.subr.mxu0 0.0
    %439 = vmatpush1.msra.mxu0 0.0
    %440 = vmatprep.subr.mxu0 0.0
    %441 = vmatpush1.msra.mxu0 0.0
    %442 = vmatprep.subr.mxu0 0.0
    %443 = vmatpush1.msra.mxu0 0.0
    %444 = vmatprep.subr.mxu0 0.0
    %445 = vmatpush1.msra.mxu0 0.0
    %446 = vmatprep.subr.mxu0 0.0
    %447 = vmatpush1.msra.mxu0 0.0
    %448 = vmatprep.subr.mxu0 0.0
    %449 = vmatpush1.msra.mxu0 0.0
    %450 = vmatprep.subr.mxu0 0.0
    %451 = vmatpush1.msra.mxu0 0.0
    %452 = vmatprep.subr.mxu0 0.0
    %453 = vmatpush1.msra.mxu0 0.0
    %454 = vmatprep.subr.mxu0 0.0
    %455 = vmatpush1.msra.mxu0 0.0
    %456 = vmatprep.subr.mxu0 0.0
    %457 = vmatpush1.msra.mxu0 0.0
    %458 = vmatprep.subr.mxu0 0.0
    %459 = vmatpush1.msra.mxu0 0.0
    %460 = vmatprep.mubr.f32.mxu0 0.0
    %461 = vmatmul.mubr.f32.gmra.mrb[0].mxu0 %v372
    %v462 = vpop.f32.mrb[0].mxu0
    %v463 = vadd.f32 %v394, %v462
    %v464 = vpop.f32.mrb[0].mxu0
    %465 = vdwg.mxu0
    %v466 = vxor.u32 %v463, 2147483648
    %v467 = vmul.f32 %v466, 1.442695
    %v468 = vpow.pop %v467
    %v469 = vadd.f32 %v468, 1.0
    %v470 = vrcp.pop %v469
    %v471 = vmul.f32 1.0, %v470
    %v472 = vld [vmem:[#allocation7] sm:$0xff]
    %v473 = vld [vmem:[#allocation7 + $0x8] sm:$0xff]
    %v474 = vld [vmem:[#allocation7 + $0x10] sm:$0xff]
    %v475 = vld [vmem:[#allocation7 + $0x18] sm:$0xff]
    %v476 = vld [vmem:[#allocation7 + $0x20] sm:$0xff]
    %v477 = vld [vmem:[#allocation7 + $0x28] sm:$0xff]
    %v478 = vld [vmem:[#allocation7 + $0x30] sm:$0xff]
    %v479 = vld [vmem:[#allocation7 + $0x38] sm:$0xff]
    %v480 = vld [vmem:[#allocation7 + $0x40] sm:$0xff]
    %v481 = vld [vmem:[#allocation7 + $0x48] sm:$0xff]
    %v482 = vld [vmem:[#allocation7 + $0x50] sm:$0xff]
    %v483 = vld [vmem:[#allocation7 + $0x58] sm:$0xff]
    %v484 = vld [vmem:[#allocation7 + $0x60] sm:$0xff]
    %v485 = vld [vmem:[#allocation7 + $0x68] sm:$0xff]
    %v486 = vld [vmem:[#allocation7 + $0x70] sm:$0xff]
    %v487 = vld [vmem:[#allocation7 + $0x78] sm:$0xff]
    %488 = vmatprep.subr.mxu0 0.0
    %489 = vmatpush1.msra.mxu0 %v472
    %490 = vmatprep.subr.mxu0 0.0
    %491 = vmatpush1.msra.mxu0 %v473
    %492 = vmatprep.subr.mxu0 0.0
    %493 = vmatpush1.msra.mxu0 %v474
    %494 = vmatprep.subr.mxu0 0.0
    %495 = vmatpush1.msra.mxu0 %v475
    %496 = vmatprep.subr.mxu0 0.0
    %497 = vmatpush1.msra.mxu0 %v476
    %498 = vmatprep.subr.mxu0 0.0
    %499 = vmatpush1.msra.mxu0 %v477
    %500 = vmatprep.subr.mxu0 0.0
    %501 = vmatpush1.msra.mxu0 %v478
    %502 = vmatprep.subr.mxu0 0.0
    %503 = vmatpush1.msra.mxu0 %v479
    %504 = vmatprep.subr.mxu0 0.0
    %505 = vmatpush1.msra.mxu0 %v480
    %506 = vmatprep.subr.mxu0 0.0
    %507 = vmatpush1.msra.mxu0 %v481
    %508 = vmatprep.subr.mxu0 0.0
    %509 = vmatpush1.msra.mxu0 %v482
    %510 = vmatprep.subr.mxu0 0.0
    %511 = vmatpush1.msra.mxu0 %v483
    %512 = vmatprep.subr.mxu0 0.0
    %513 = vmatpush1.msra.mxu0 %v484
    %514 = vmatprep.subr.mxu0 0.0
    %515 = vmatpush1.msra.mxu0 %v485
    %516 = vmatprep.subr.mxu0 0.0
    %517 = vmatpush1.msra.mxu0 %v486
    %518 = vmatprep.subr.mxu0 0.0
    %519 = vmatpush1.msra.mxu0 %v487
    %520 = vmatprep.subr.mxu0 0.0
    %521 = vmatpush1.msra.mxu0 0.0
    %522 = vmatprep.subr.mxu0 0.0
    %523 = vmatpush1.msra.mxu0 0.0
    %524 = vmatprep.subr.mxu0 0.0
    %525 = vmatpush1.msra.mxu0 0.0
    %526 = vmatprep.subr.mxu0 0.0
    %527 = vmatpush1.msra.mxu0 0.0
    %528 = vmatprep.subr.mxu0 0.0
    %529 = vmatpush1.msra.mxu0 0.0
    %530 = vmatprep.subr.mxu0 0.0
    %531 = vmatpush1.msra.mxu0 0.0
    %532 = vmatprep.subr.mxu0 0.0
    %533 = vmatpush1.msra.mxu0 0.0
    %534 = vmatprep.subr.mxu0 0.0
    %535 = vmatpush1.msra.mxu0 0.0
    %536 = vmatprep.subr.mxu0 0.0
    %537 = vmatpush1.msra.mxu0 0.0
    %538 = vmatprep.subr.mxu0 0.0
    %539 = vmatpush1.msra.mxu0 0.0
    %540 = vmatprep.subr.mxu0 0.0
    %541 = vmatpush1.msra.mxu0 0.0
    %542 = vmatprep.subr.mxu0 0.0
    %543 = vmatpush1.msra.mxu0 0.0
    %544 = vmatprep.subr.mxu0 0.0
    %545 = vmatpush1.msra.mxu0 0.0
    %546 = vmatprep.subr.mxu0 0.0
    %547 = vmatpush1.msra.mxu0 0.0
    %548 = vmatprep.subr.mxu0 0.0
    %549 = vmatpush1.msra.mxu0 0.0
    %550 = vmatprep.subr.mxu0 0.0
    %551 = vmatpush1.msra.mxu0 0.0
    %552 = vmatprep.mubr.f32.mxu0 0.0
    %553 = vmatmul.mubr.f32.gmra.mrb[0].mxu0 %v471
    %v554 = vpop.f32.mrb[0].mxu0
    %v555 = vadd.f32 0.0, %v554
    %v556 = vpop.f32.mrb[0].mxu0
    %557 = vdwg.mxu0
    %vm558 = vcmp.gt.f32.partialorder %v555, 0.0
    %v559 = vmax.f32 %v555, 1e-12
    %v560 = vsel %vm558, %v559, 1.0
    %v561 = vrcp.pop %v560
    %v562 = vmul.f32 %v471, %v561
    %563 = vst [vmem:[%s10] sm:$0xff] %v562
    // Predicated region
    $region58: #{seq2seq_policy_forward.1} parent=1 // pred_check
      _
    $region59: #{seq2seq_policy_forward.1} parent=1 // pred_check_branch
      %565 = sbr.rel (0) target = $region61
    $region60: #{seq2seq_policy_forward.1} parent=1 // pred_region
      _
    $region61: #{seq2seq_policy_forward.1} parent=1 // pred_fallthru
      _
    // Predicated region
    $region62: #{seq2seq_policy_forward.1} parent=1 // pred_check
      _
    $region63: #{seq2seq_policy_forward.1} parent=1 // pred_check_branch
      %567 = sbr.rel (0) target = $region65
    $region64: #{seq2seq_policy_forward.1} parent=1 // pred_region
      _
    $region65: #{seq2seq_policy_forward.1} parent=1 // pred_fallthru
      _
    %568 = vsyncpa [#allocation3], 1
    %569 = vsyncpa [#allocation5], 1
    %570 = vsyncpa [#allocation8], 1

</llo_original>
